<compile_context>
chip_gen: v6e
topology: v6e:2x2x1
jax: 0.10.0
libtpu: 0.0.40
codegen_flags: <defaults>
</compile_context>

<pallas_src>
import jax
import jax.numpy as jnp
from jax.experimental import pallas as pl
from jax.experimental.pallas import tpu as pltpu


# ----------------------------------------------------------------------------- kernel
def patch_embed_kernel(x_ref, o_ref):
    """x_ref: (C, hw_tile) slab; o_ref: (hw_tile, C) slab.  Pure XLU transpose."""
    o_ref[...] = x_ref[...].T


# ----------------------------------------------------------------------------- helpers
def _round_up(a, m):
    return (a + m - 1) // m * m


def _sublane(itemsize):
    """Sublane padding of the second-minor dim: 8 for 4-byte, 16 for bf16, 32 for int8."""
    return max(8, 32 // itemsize)


def _block_vmem_bytes(C, hw_tile, itemsize):
    """Double-buffered, (sublane,128)-tile-padded VMEM footprint of one grid step."""
    sub = _sublane(itemsize)
    in_b = _round_up(C, sub) * _round_up(hw_tile, 128) * itemsize        # (C, hw_tile)
    out_b = _round_up(hw_tile, sub) * _round_up(C, 128) * itemsize       # (hw_tile, C)
    return 2 * (in_b + out_b)                                            # 2x: double buffer


def _vmem_budget_and_limit():
    """Generation-aware: v7x has 64 MiB VMEM per TC, v5e/v6e 128 MiB."""
    try:
        cap = int(getattr(pltpu.get_tpu_info(), "vmem_capacity_bytes", 64 << 20))
    except Exception:  # not queryable (e.g. tracing off-device) -> assume tightest gen
        cap = 64 << 20
    limit = min(cap // 2, 48 << 20)   # scoped-VMEM limit we request from the compiler
    budget = limit // 2               # resident double-buffered blocks stay <= half of it
    return budget, limit


def _pick_hw_tile(HW, C, itemsize, budget, batch, min_steps=4):
    """Largest 128-multiple divisor of HW that fits the VMEM budget, preferring
    enough grid steps for pipeline overlap / v7x two-TensorCore sharding."""
    if HW % 128 == 0:
        cands = [t for t in range(128, HW + 1, 128) if HW % t == 0]
    else:
        # No 128-multiple divisor exists; full-extent dims are exempt from the
        # (8,128) block rule, so use the whole HW axis as one tile.
        cands = [HW]
    fitting = [t for t in cands if _block_vmem_bytes(C, t, itemsize) <= budget]
    if not fitting:
        fitting = [min(cands)]        # over budget even at the smallest tile; handled by
                                      # raising vmem_limit_bytes in the wrapper.
    for t in sorted(fitting, reverse=True):
        if batch * (HW // t) >= min_steps:
            return t
    return min(fitting)               # HW too small for min_steps: maximise step count


# ----------------------------------------------------------------------------- wrapper
def patch_embed(x):
    """PatchEmbed.forward: (B, C, H, W) -> (B, H*W, C)."""
    B, C, H, W = x.shape
    HW = H * W
    itemsize = jnp.dtype(x.dtype).itemsize
    x3 = x.reshape(B, C, HW)          # contiguous trailing-dim merge: no HBM copy

    budget, vmem_limit = _vmem_budget_and_limit()
    hw_tile = _pick_hw_tile(HW, C, itemsize, budget, B)
    # Never let a (possibly over-budget fallback) tile exceed the compiler limit.
    vmem_limit = min(
        max(vmem_limit, _block_vmem_bytes(C, hw_tile, itemsize) + (2 << 20)),
        128 << 20,
    )

    grid = (B, HW // hw_tile)
    bytes_accessed = 2 * B * C * HW * itemsize    # pure HBM streaming, zero FLOPs

    return pl.pallas_call(
        patch_embed_kernel,
        out_shape=jax.ShapeDtypeStruct((B, HW, C), x.dtype),
        grid=grid,
        in_specs=[pl.BlockSpec((pl.Squeezed(), C, hw_tile), lambda b, j: (b, 0, j))],
        out_specs=pl.BlockSpec((pl.Squeezed(), hw_tile, C), lambda b, j: (b, j, 0)),
        compiler_params=pltpu.CompilerParams(
            dimension_semantics=("parallel", "parallel"),  # independent batch/HW tiles
            vmem_limit_bytes=vmem_limit,
        ),
        cost_estimate=pl.CostEstimate(
            flops=0, transcendentals=0, bytes_accessed=bytes_accessed
        ),
    )(x3)


# ----------------------------------------------------------------------------- main
if __name__ == "__main__":
    B, C, H, W = 2, 4, 16, 16
    key = jax.random.PRNGKey(0)
    x = jax.random.normal(key, (B, C, H, W), jnp.float32)

    y = jax.jit(patch_embed)(x)
    y = jax.block_until_ready(y)

    # Pure layout op -> must match the reference bit-exactly.
    ref = jnp.transpose(x.reshape(B, C, H * W), (0, 2, 1))
    assert y.shape == (B, H * W, C)
    assert bool(jnp.array_equal(y, ref))

    print("KERNEL_OK")
</pallas_src>

<mosaic_0001>
module attributes {stable_mosaic.version = 11 : i64} {
  func.func @patch_embed_kernel(%arg0: i32, %arg1: i32, %arg2: memref<1x4x128xf32, #tpu.memory_space<vmem>>, %arg3: memref<1x128x4xf32, #tpu.memory_space<vmem>>) attributes {dimension_semantics = [#tpu.dimension_semantics<parallel>, #tpu.dimension_semantics<parallel>], iteration_bounds = array<i64: 2, 2>, scalar_prefetch = 0 : i64, scratch_operands = 0 : i64, tpu.core_type = #tpu.core_type<tc>, window_params = [{transform_indices = @transform_0, window_bounds = array<i64: 1, 4, 128>}, {transform_indices = @transform_1, window_bounds = array<i64: 1, 128, 4>}]} {
    %c0 = arith.constant 0 : index
    %c0_0 = arith.constant 0 : index
    %c0_1 = arith.constant 0 : index
    %0 = vector.load %arg2[%c0, %c0_0, %c0_1] : memref<1x4x128xf32, #tpu.memory_space<vmem>>, vector<1x4x128xf32>
    %1 = vector.shape_cast %0 : vector<1x4x128xf32> to vector<4x128xf32>
    %2 = tpu.transpose %1, [1, 0] : vector<4x128xf32> -> vector<128x4xf32>
    %c0_2 = arith.constant 0 : index
    %c0_3 = arith.constant 0 : index
    %c0_4 = arith.constant 0 : index
    %3 = vector.load %arg3[%c0_2, %c0_3, %c0_4] : memref<1x128x4xf32, #tpu.memory_space<vmem>>, vector<1x128x4xf32>
    %4 = vector.shape_cast %3 : vector<1x128x4xf32> to vector<128x4xf32>
    %5 = vector.shape_cast %2 : vector<128x4xf32> to vector<1x128x4xf32>
    tpu.vector_store %arg3[%c0_2, %c0_3, %c0_4], %5 {strides = array<i32>} : memref<1x128x4xf32, #tpu.memory_space<vmem>>, vector<1x128x4xf32>,
    return
  }
  func.func @transform_0(%arg0: i32, %arg1: i32) -> (i32, i32, i32) {
    %c0_i32 = arith.constant 0 : i32
    %c0_i32_0 = arith.constant 0 : i32
    return %arg0, %c0_i32, %arg1 : i32, i32, i32
  }
  func.func @transform_1(%arg0: i32, %arg1: i32) -> (i32, i32, i32) {
    %c0_i32 = arith.constant 0 : i32
    %c0_i32_0 = arith.constant 0 : i32
    return %arg0, %arg1, %c0_i32 : i32, i32, i32
  }
}

</mosaic_0001>

<llo_original>
// kernel: patch_embed.1
$region0: #{patch_embed.1}
  #allocation0 [shape = 'u32[]', space=smem, size = 0x4, offset = 0x4, fixed_abs, tag = 'smem constant byte address 0x4 - core index']
  #allocation1 [shape = 'u32[144,128]{1,0:T(1,128)}', space=vmem, size = 0x12000, scoped, tag = 'internal scratch']
  %s0 = inlined_call_operand.vmem [shape: f32[2,4,256], index: 0, kind: input, shape index: {}]
  %s1 = inlined_call_operand.vmem [shape: f32[2,256,4], index: 1, kind: output, shape index: {}]
  %s2 = sld [smem:[#allocation0]]
  $region37: #{patch_embed.1} parent=0
    _
  %s4 = ssub.s32 1, %s2
  %s5 = scalar_select 0, %s4, %s2
  loop: start=0, step=1, limit=6
  $region2: #{patch_embed.1} parent=0 // loop_pre_header
    _
  $region3: #{patch_embed.1} parent=0 // loop_header
    %s7 = sphi 0, %s11
    %p8 = scmp.ge.s32.totalorder %s7, 6
    %s14 = sphi 0, %s26
    %s15 = sphi 0, %s22
    %s16 = sphi 0, %s14
    %s17 = sphi 0, %s15
    %s18 = sphi 0, %s16
    %s19 = sphi 0, %s17
    %s31 = sphi 0, %s33
    %s34 = sphi 0, %s31
    %s35 = sphi 0, %s34
    %s51 = sphi 0, %s35
    %s59 = sphi 0, %s61
    %s62 = sphi 0, %s59
    %s63 = sphi 0, %s62
    %s79 = sphi 0, %s63
  $region4: #{patch_embed.1} parent=0 // loop_header_branch
    %10 = sbr.rel (%p8) target = $region8
  $region5: #{patch_embed.1} parent=0 // loop_body
    %s12 = ssub.s32 %s7, 1
    %s13 = ssub.s32 %s7, 2
    %s20 = sadd.s32 1, %s15
    %p21 = scmp.ge.s32.totalorder %s20, 2
    %s22 = scalar_select %p21, 0, %s20
    %s23 = sadd.s32 1, %s14
    %s24 = scalar_select %p21, %s23, %s14
    %p25 = scmp.ge.s32.totalorder %s24, 2
    %s26 = scalar_select %p25, 0, %s24
    %s27 = ssub.s32 %s14, %s26
    %s28 = ssub.s32 %s15, %s22
    %s29 = sor.u32 %s27, %s28
    %p30 = scmp.eq.s32.totalorder %s29, 0
    %s32 = sadd.s32 %s31, 1
    %s33 = scalar_select %p30, %s31, %s32
    %p36 = pneg %p30
    %p37 = scmp.eq.s32.totalorder %s7, 3
    %p38 = por %p36, %p37
    %p39 = scmp.ne.s32.totalorder %s31, %s34
    %p40 = scmp.eq.s32.totalorder %s7, 0
    %p41 = por %p39, %p40
    %p42 = scmp.ne.s32.totalorder %s31, %s34
    %p43 = scmp.eq.s32.totalorder %s12, 3
    %p44 = por %p42, %p43
    %p45 = scmp.ne.s32.totalorder %s34, %s35
    %p46 = scmp.eq.s32.totalorder %s12, 0
    %p47 = por %p45, %p46
    %p48 = scmp.ne.s32.totalorder %s34, %s35
    %p49 = scmp.eq.s32.totalorder %s13, 3
    %p50 = por %p48, %p49
    %p52 = scmp.ne.s32.totalorder %s35, %s51
    %p53 = scmp.eq.s32.totalorder %s13, 0
    %p54 = por %p52, %p53
    %s55 = ssub.s32 %s14, %s26
    %s56 = ssub.s32 %s15, %s22
    %s57 = sor.u32 %s55, %s56
    %p58 = scmp.eq.s32.totalorder %s57, 0
    %s60 = sadd.s32 %s59, 1
    %s61 = scalar_select %p58, %s59, %s60
    %p64 = pneg %p58
    %p65 = scmp.eq.s32.totalorder %s7, 3
    %p66 = por %p64, %p65
    %p67 = scmp.ne.s32.totalorder %s59, %s62
    %p68 = scmp.eq.s32.totalorder %s7, 0
    %p69 = por %p67, %p68
    %p70 = scmp.ne.s32.totalorder %s59, %s62
    %p71 = scmp.eq.s32.totalorder %s12, 3
    %p72 = por %p70, %p71
    %p73 = scmp.ne.s32.totalorder %s62, %s63
    %p74 = scmp.eq.s32.totalorder %s12, 0
    %p75 = por %p73, %p74
    %p76 = scmp.ne.s32.totalorder %s62, %s63
    %p77 = scmp.eq.s32.totalorder %s13, 3
    %p78 = por %p76, %p77
    %p80 = scmp.ne.s32.totalorder %s63, %s79
    %p81 = scmp.eq.s32.totalorder %s13, 0
    %p82 = por %p80, %p81
    %p83 = scmp.le.s32.totalorder 1, %s7
    %p84 = scmp.lt.s32.totalorder %s7, 5
    %p85 = pnand %p83, %p84
    %p86 = pneg %p85
    // Predicated region
    $region9: #{patch_embed.1} parent=5 // pred_check
      _
    $region10: #{patch_embed.1} parent=5 // pred_check_branch
      %88 = sbr.rel (%p85) target = $region12
    $region11: #{patch_embed.1} parent=5 // pred_region
      %s89 = ssub.s32 %s7, 1
    $region12: #{patch_embed.1} parent=5 // pred_fallthru
      _
    %p90 = scmp.lt.s32.totalorder %s7, 4
    // Predicated region
    $region13: #{patch_embed.1} parent=5 // pred_check
      %p91 = pneg %p90
    $region14: #{patch_embed.1} parent=5 // pred_check_branch
      %93 = sbr.rel (%p91) target = $region16
    $region15: #{patch_embed.1} parent=5 // pred_region
      // Predicated region
      $region17: #{patch_embed.1} parent=15 // pred_check
        %p94 = pneg %p41
      $region18: #{patch_embed.1} parent=15 // pred_check_branch
        %96 = sbr.rel (%p94) target = $region20
      $region19: #{patch_embed.1} parent=15 // pred_region
        %p97 = scmp.lt.s32.totalorder %s14, 1
        %s98 = scalar_select %p97, %s14, 1
        %p99 = scmp.lt.s32.totalorder %s15, 1
        %s100 = scalar_select %p99, %s15, 1
        %s101 = smul.addr %s98, 2
        %s102 = sadd.s32 %s100, %s101
        %s103 = smul.addr %s102, 4
        %s104 = scalar_lea.vmem %s0, %s103
      $region20: #{patch_embed.1} parent=15 // pred_fallthru
        _
    $region16: #{patch_embed.1} parent=5 // pred_fallthru
      _
    %p105 = scmp.le.s32.totalorder 1, %s7
    %p106 = scmp.lt.s32.totalorder %s7, 5
    %p107 = pnand %p105, %p106
    %p108 = pneg %p107
    // Predicated region
    $region21: #{patch_embed.1} parent=5 // pred_check
      _
    $region22: #{patch_embed.1} parent=5 // pred_check_branch
      %110 = sbr.rel (%p107) target = $region24
    $region23: #{patch_embed.1} parent=5 // pred_region
      %s111 = ssub.s32 %s7, 1
      %p112 = scmp.lt.s32.totalorder %s16, 1
      %s113 = scalar_select %p112, %s16, 1
      %p114 = scmp.lt.s32.totalorder %s17, 1
      %s115 = scalar_select %p114, %s17, 1
      %s116 = smul.addr %s113, 2
      %s117 = sadd.s32 %s115, %s116
      %s118 = smul.addr %s117, 4
      %s119 = scalar_lea.vmem %s0, %s118
      %p120 = pneg %p47
      %p121 = pneg %p44
      %p122 = pneg %p75
      %p123 = pneg %p72
      %s124 = smul.u32 16, %s17
      %p125 = scmp.lt.s32.totalorder %s16, 1
      %s126 = scalar_select %p125, %s16, 1
      %p127 = scmp.lt.s32.totalorder %s124, 31
      %s128 = scalar_select %p127, %s124, 31
      %s129 = smul.addr %s126, 32
      %s130 = sadd.s32 %s128, %s129
      %s131 = smul.addr %s130, 8
      %s132 = scalar_lea.vmem %s1, %s131
      %p133 = scmp.lt.s32.totalorder %s16, 1
      %s134 = scalar_select %p133, %s16, 1
      %p135 = scmp.lt.s32.totalorder %s17, 1
      %s136 = scalar_select %p135, %s17, 1
      %s137 = smul.addr %s134, 2
      %s138 = sadd.s32 %s136, %s137
      %s139 = smul.addr %s138, 4
      %s140 = scalar_lea.vmem %s0, %s139
      %s141 = smul.u32 16, %s17
      %p142 = scmp.lt.s32.totalorder %s16, 1
      %s143 = scalar_select %p142, %s16, 1
      %p144 = scmp.lt.s32.totalorder %s141, 31
      %s145 = scalar_select %p144, %s141, 31
      %s146 = smul.addr %s143, 32
      %s147 = sadd.s32 %s145, %s146
      %s148 = smul.addr %s147, 8
      %s149 = scalar_lea.vmem %s1, %s148
      %s150 = smul.u32 16, %s17
      %v151 = vld [vmem:[%s140] sm:$0xf]
      %152 = vxpose.xlu0.b32.start [1/16] %v151, 128
      %153 = vxpose.xlu0.b32.cont [2/16] 0.0, 128
      %154 = vxpose.xlu0.b32.cont [3/16] 0.0, 128
      %155 = vxpose.xlu0.b32.cont [4/16] 0.0, 128
      %156 = vxpose.xlu0.b32.cont [5/16] 0.0, 128
      %157 = vxpose.xlu0.b32.cont [6/16] 0.0, 128
      %158 = vxpose.xlu0.b32.cont [7/16] 0.0, 128
      %159 = vxpose.xlu0.b32.cont [8/16] 0.0, 128
      %160 = vxpose.xlu0.b32.cont [9/16] 0.0, 128
      %161 = vxpose.xlu0.b32.cont [10/16] 0.0, 128
      %162 = vxpose.xlu0.b32.cont [11/16] 0.0, 128
      %163 = vxpose.xlu0.b32.cont [12/16] 0.0, 128
      %164 = vxpose.xlu0.b32.cont [13/16] 0.0, 128
      %165 = vxpose.xlu0.b32.cont [14/16] 0.0, 128
      %166 = vxpose.xlu0.b32.cont [15/16] 0.0, 128
      %167 = vxpose.xlu0.b32.end [16/16] 0.0, 128
      %v168 = vpop.trf.xlu0
      %v169 = vpop.trf.xlu0
      %v170 = vpop.trf.xlu0
      %v171 = vpop.trf.xlu0
      %v172 = vpop.trf.xlu0
      %v173 = vpop.trf.xlu0
      %v174 = vpop.trf.xlu0
      %v175 = vpop.trf.xlu0
      %v176 = vpop.trf.xlu0
      %v177 = vpop.trf.xlu0
      %v178 = vpop.trf.xlu0
      %v179 = vpop.trf.xlu0
      %v180 = vpop.trf.xlu0
      %v181 = vpop.trf.xlu0
      %v182 = vpop.trf.xlu0
      %v183 = vpop.trf.xlu0
      %vm184 = vcmask 31744
      %185 = vst.msk [vmem:[%s149] sm:$0xff] %vm184, %v168
      %186 = vst.msk [vmem:[%s149 + $0x8] sm:$0xff] %vm184, %v169
      %187 = vst.msk [vmem:[%s149 + $0x10] sm:$0xff] %vm184, %v170
      %188 = vst.msk [vmem:[%s149 + $0x18] sm:$0xff] %vm184, %v171
      %189 = vst.msk [vmem:[%s149 + $0x20] sm:$0xff] %vm184, %v172
      %190 = vst.msk [vmem:[%s149 + $0x28] sm:$0xff] %vm184, %v173
      %191 = vst.msk [vmem:[%s149 + $0x30] sm:$0xff] %vm184, %v174
      %192 = vst.msk [vmem:[%s149 + $0x38] sm:$0xff] %vm184, %v175
      %193 = vst.msk [vmem:[%s149 + $0x40] sm:$0xff] %vm184, %v176
      %194 = vst.msk [vmem:[%s149 + $0x48] sm:$0xff] %vm184, %v177
      %195 = vst.msk [vmem:[%s149 + $0x50] sm:$0xff] %vm184, %v178
      %196 = vst.msk [vmem:[%s149 + $0x58] sm:$0xff] %vm184, %v179
      %197 = vst.msk [vmem:[%s149 + $0x60] sm:$0xff] %vm184, %v180
      %198 = vst.msk [vmem:[%s149 + $0x68] sm:$0xff] %vm184, %v181
      %199 = vst.msk [vmem:[%s149 + $0x70] sm:$0xff] %vm184, %v182
      %200 = vst.msk [vmem:[%s149 + $0x78] sm:$0xff] %vm184, %v183
      %s201 = smul.u32 16, %s17
      %p202 = scmp.lt.s32.totalorder %s16, 1
      %s203 = scalar_select %p202, %s16, 1
      %p204 = scmp.lt.s32.totalorder %s201, 31
      %s205 = scalar_select %p204, %s201, 31
      %s206 = smul.addr %s203, 32
      %s207 = sadd.s32 %s205, %s206
      %s208 = smul.addr %s207, 8
      %s209 = scalar_lea.vmem %s1, %s208
      // Predicated region
      $region25: #{patch_embed.1} parent=23 // pred_check
        %p210 = pneg %p72
      $region26: #{patch_embed.1} parent=23 // pred_check_branch
        %212 = sbr.rel (%p210) target = $region28
      $region27: #{patch_embed.1} parent=23 // pred_region
        %s213 = smul.u32 16, %s17
      $region28: #{patch_embed.1} parent=23 // pred_fallthru
        _
    $region24: #{patch_embed.1} parent=5 // pred_fallthru
      _
    %p214 = scmp.le.s32.totalorder 2, %s7
    // Predicated region
    $region29: #{patch_embed.1} parent=5 // pred_check
      %p215 = pneg %p214
    $region30: #{patch_embed.1} parent=5 // pred_check_branch
      %217 = sbr.rel (%p215) target = $region32
    $region31: #{patch_embed.1} parent=5 // pred_region
      %s218 = ssub.s32 %s7, 2
      // Predicated region
      $region33: #{patch_embed.1} parent=31 // pred_check
        %p219 = pneg %p78
      $region34: #{patch_embed.1} parent=31 // pred_check_branch
        %221 = sbr.rel (%p219) target = $region36
      $region35: #{patch_embed.1} parent=31 // pred_region
        %s222 = smul.u32 16, %s19
        %p223 = scmp.lt.s32.totalorder %s18, 1
        %s224 = scalar_select %p223, %s18, 1
        %p225 = scmp.lt.s32.totalorder %s222, 31
        %s226 = scalar_select %p225, %s222, 31
        %s227 = smul.addr %s224, 32
        %s228 = sadd.s32 %s226, %s227
        %s229 = smul.addr %s228, 8
        %s230 = scalar_lea.vmem %s1, %s229
      $region36: #{patch_embed.1} parent=31 // pred_fallthru
        _
    $region32: #{patch_embed.1} parent=5 // pred_fallthru
      _
  $region6: #{patch_embed.1} parent=0 // loop_footer
    %s11 = sadd.s32 1, %s7
  $region7: #{patch_embed.1} parent=0 // loop_footer_branch
    %6 = sbr.rel target = $region3
  $region8: #{patch_embed.1} parent=0 // loop_exit
    _

</llo_original>
